<compile_context>
chip_gen: v7x
topology: tpu7x:2x2x1
jax: 0.10.0
libtpu: 0.0.40
codegen_flags: <defaults>
</compile_context>

<pallas_src>
import jax
import jax.numpy as jnp
from jax.experimental import pallas as pl
from jax.experimental.pallas import tpu as pltpu


def _label_embed_kernel(idx_ref, tables_ref, out_ref):
    # idx_ref:    VMEM (K, B, 1)     int32   -- per-key label indices
    # tables_ref: VMEM (K, C_max, D) float32 -- zero-padded embedding tables
    # out_ref:    VMEM (B, K*D)      float32 -- concat([emb_k(idx_k)], axis=1)
    K, C_max, D = tables_ref.shape

    key_blocks = []
    for k in range(K):                      # static unroll over condition keys
        idx_k = idx_ref[k]                  # (B, 1) int32
        tab_k = tables_ref[k]               # (C_max, D)
        # Full-(B, D) VPU select chain over the (few) classes.
        # Unmatched indices leave a zero row.
        acc = jnp.zeros((idx_k.shape[0], D), dtype=tables_ref.dtype)
        for c in range(C_max):              # O(C_max); fine for tiny C_max
            acc = jnp.where(idx_k == c, tab_k[c:c + 1, :], acc)
        key_blocks.append(acc)              # (B, D)

    # Single store of the concatenated embedding: (B, K*D).
    out_ref[...] = jnp.concatenate(key_blocks, axis=1).astype(out_ref.dtype)


def label_embedder_forward(condition, condition_keys, tables):
    """condition: {key: (B,) int}, tables: (K, C_max, D) f32 -> (B, K*D) f32.

    Output column order matches torch.cat([emb_k(cond_k) for k in keys], dim=1).
    """
    K, C_max, D = tables.shape
    B = condition[condition_keys[0]].shape[0]

    # Stack indices to (K, B, 1) int32 so the kernel can do (B, D)-wide selects.
    idx = jnp.stack(
        [condition[k].astype(jnp.int32) for k in condition_keys], axis=0
    )[..., None]

    out = pl.pallas_call(
        _label_embed_kernel,
        out_shape=jax.ShapeDtypeStruct((B, K * D), jnp.float32),
        # No grid: whole arrays live in VMEM for a single kernel invocation
        # (no pipeline scaffolding, no double-buffering).
        in_specs=[
            pl.BlockSpec(memory_space=pltpu.MemorySpace.VMEM),   # idx
            pl.BlockSpec(memory_space=pltpu.MemorySpace.VMEM),   # tables
        ],
        out_specs=pl.BlockSpec(memory_space=pltpu.MemorySpace.VMEM),
    )(idx, tables)
    return out


if __name__ == "__main__":
    # Module config (matches LabelEmbedder defaults)
    emb_dim = 32
    condition_keys = ["race", "sex"]
    num_classes = {"race": 3, "sex": 2}
    B = 8

    key = jax.random.PRNGKey(0)
    k_tabs, k_idx = jax.random.split(key)

    # Deterministic parameter init: nn.Embedding default is N(0, 1).
    C_max = max(num_classes.values())
    K = len(condition_keys)
    table_keys = jax.random.split(k_tabs, K)
    tables = []
    for i, ckey in enumerate(condition_keys):
        c = num_classes[ckey]
        tab = jax.random.normal(table_keys[i], (c, emb_dim), dtype=jnp.float32)
        tab = jnp.pad(tab, ((0, C_max - c), (0, 0)))   # zero-pad unused rows
        tables.append(tab)
    tables = jnp.stack(tables, axis=0)                 # (K, C_max, D)

    # Example condition dict: key -> (B,) int labels.
    idx_keys = jax.random.split(k_idx, K)
    condition = {
        ckey: jax.random.randint(idx_keys[i], (B,), 0, num_classes[ckey],
                                 dtype=jnp.int32)
        for i, ckey in enumerate(condition_keys)
    }

    out = label_embedder_forward(condition, condition_keys, tables)
    out = jax.block_until_ready(out)

    # Pure-JAX reference: embedding lookup + concat along feature dim.
    ref = jnp.concatenate(
        [tables[i][condition[ckey]] for i, ckey in enumerate(condition_keys)],
        axis=1)
    assert out.shape == (B, K * emb_dim)
    assert jnp.allclose(out, ref, atol=1e-6), "mismatch vs reference"

    print("KERNEL_OK")
</pallas_src>

<mosaic_0001>
module attributes {stable_mosaic.version = 11 : i64} {
  func.func @_label_embed_kernel(%arg0: memref<2x8x1xi32, #tpu.memory_space<vmem>>, %arg1: memref<2x3x32xf32, #tpu.memory_space<vmem>>, %arg2: memref<8x64xf32, #tpu.memory_space<vmem>>) attributes {dimension_semantics = [], scalar_prefetch = 0 : i64, scratch_operands = 0 : i64, tpu.core_type = #tpu.core_type<tc>} {
    %c0 = arith.constant 0 : index
    %c0_0 = arith.constant 0 : index
    %c0_1 = arith.constant 0 : index
    %0 = vector.load %arg0[%c0, %c0_0, %c0_1] : memref<2x8x1xi32, #tpu.memory_space<vmem>>, vector<1x8x1xi32>
    %1 = vector.shape_cast %0 : vector<1x8x1xi32> to vector<8x1xi32>
    %c0_2 = arith.constant 0 : index
    %c0_3 = arith.constant 0 : index
    %c0_4 = arith.constant 0 : index
    %2 = vector.load %arg1[%c0_2, %c0_3, %c0_4] : memref<2x3x32xf32, #tpu.memory_space<vmem>>, vector<1x3x32xf32>
    %3 = vector.shape_cast %2 : vector<1x3x32xf32> to vector<3x32xf32>
    %cst = arith.constant 0.000000e+00 : f32
    %4 = vector.broadcast %cst : f32 to vector<8x32xf32>
    %c0_i32 = arith.constant 0 : i32
    %5 = vector.broadcast %c0_i32 : i32 to vector<8x1xi32>
    %6 = arith.cmpi eq, %1, %5 : vector<8x1xi32>
    %7 = vector.extract_strided_slice %3 {offsets = [0, 0], sizes = [1, 32], strides = [1, 1]} : vector<3x32xf32> to vector<1x32xf32>
    %8 = vector.shape_cast %6 : vector<8x1xi1> to vector<8x1xi1>
    %9 = vector.broadcast %8 : vector<8x1xi1> to vector<8x32xi1>
    %10 = vector.shape_cast %7 : vector<1x32xf32> to vector<1x32xf32>
    %11 = vector.broadcast %10 : vector<1x32xf32> to vector<8x32xf32>
    %12 = arith.select %9, %11, %4 : vector<8x32xi1>, vector<8x32xf32>
    %c1_i32 = arith.constant 1 : i32
    %13 = vector.broadcast %c1_i32 : i32 to vector<8x1xi32>
    %14 = arith.cmpi eq, %1, %13 : vector<8x1xi32>
    %15 = vector.extract_strided_slice %3 {offsets = [1, 0], sizes = [1, 32], strides = [1, 1]} : vector<3x32xf32> to vector<1x32xf32>
    %16 = vector.shape_cast %14 : vector<8x1xi1> to vector<8x1xi1>
    %17 = vector.broadcast %16 : vector<8x1xi1> to vector<8x32xi1>
    %18 = vector.shape_cast %15 : vector<1x32xf32> to vector<1x32xf32>
    %19 = vector.broadcast %18 : vector<1x32xf32> to vector<8x32xf32>
    %20 = arith.select %17, %19, %12 : vector<8x32xi1>, vector<8x32xf32>
    %c2_i32 = arith.constant 2 : i32
    %21 = vector.broadcast %c2_i32 : i32 to vector<8x1xi32>
    %22 = arith.cmpi eq, %1, %21 : vector<8x1xi32>
    %23 = vector.extract_strided_slice %3 {offsets = [2, 0], sizes = [1, 32], strides = [1, 1]} : vector<3x32xf32> to vector<1x32xf32>
    %24 = vector.shape_cast %22 : vector<8x1xi1> to vector<8x1xi1>
    %25 = vector.broadcast %24 : vector<8x1xi1> to vector<8x32xi1>
    %26 = vector.shape_cast %23 : vector<1x32xf32> to vector<1x32xf32>
    %27 = vector.broadcast %26 : vector<1x32xf32> to vector<8x32xf32>
    %28 = arith.select %25, %27, %20 : vector<8x32xi1>, vector<8x32xf32>
    %c1 = arith.constant 1 : index
    %c0_5 = arith.constant 0 : index
    %c0_6 = arith.constant 0 : index
    %29 = vector.load %arg0[%c1, %c0_5, %c0_6] : memref<2x8x1xi32, #tpu.memory_space<vmem>>, vector<1x8x1xi32>
    %30 = vector.shape_cast %29 : vector<1x8x1xi32> to vector<8x1xi32>
    %c1_7 = arith.constant 1 : index
    %c0_8 = arith.constant 0 : index
    %c0_9 = arith.constant 0 : index
    %31 = vector.load %arg1[%c1_7, %c0_8, %c0_9] : memref<2x3x32xf32, #tpu.memory_space<vmem>>, vector<1x3x32xf32>
    %32 = vector.shape_cast %31 : vector<1x3x32xf32> to vector<3x32xf32>
    %cst_10 = arith.constant 0.000000e+00 : f32
    %33 = vector.broadcast %cst_10 : f32 to vector<8x32xf32>
    %c0_i32_11 = arith.constant 0 : i32
    %34 = vector.broadcast %c0_i32_11 : i32 to vector<8x1xi32>
    %35 = arith.cmpi eq, %30, %34 : vector<8x1xi32>
    %36 = vector.extract_strided_slice %32 {offsets = [0, 0], sizes = [1, 32], strides = [1, 1]} : vector<3x32xf32> to vector<1x32xf32>
    %37 = vector.shape_cast %35 : vector<8x1xi1> to vector<8x1xi1>
    %38 = vector.broadcast %37 : vector<8x1xi1> to vector<8x32xi1>
    %39 = vector.shape_cast %36 : vector<1x32xf32> to vector<1x32xf32>
    %40 = vector.broadcast %39 : vector<1x32xf32> to vector<8x32xf32>
    %41 = arith.select %38, %40, %33 : vector<8x32xi1>, vector<8x32xf32>
    %c1_i32_12 = arith.constant 1 : i32
    %42 = vector.broadcast %c1_i32_12 : i32 to vector<8x1xi32>
    %43 = arith.cmpi eq, %30, %42 : vector<8x1xi32>
    %44 = vector.extract_strided_slice %32 {offsets = [1, 0], sizes = [1, 32], strides = [1, 1]} : vector<3x32xf32> to vector<1x32xf32>
    %45 = vector.shape_cast %43 : vector<8x1xi1> to vector<8x1xi1>
    %46 = vector.broadcast %45 : vector<8x1xi1> to vector<8x32xi1>
    %47 = vector.shape_cast %44 : vector<1x32xf32> to vector<1x32xf32>
    %48 = vector.broadcast %47 : vector<1x32xf32> to vector<8x32xf32>
    %49 = arith.select %46, %48, %41 : vector<8x32xi1>, vector<8x32xf32>
    %c2_i32_13 = arith.constant 2 : i32
    %50 = vector.broadcast %c2_i32_13 : i32 to vector<8x1xi32>
    %51 = arith.cmpi eq, %30, %50 : vector<8x1xi32>
    %52 = vector.extract_strided_slice %32 {offsets = [2, 0], sizes = [1, 32], strides = [1, 1]} : vector<3x32xf32> to vector<1x32xf32>
    %53 = vector.shape_cast %51 : vector<8x1xi1> to vector<8x1xi1>
    %54 = vector.broadcast %53 : vector<8x1xi1> to vector<8x32xi1>
    %55 = vector.shape_cast %52 : vector<1x32xf32> to vector<1x32xf32>
    %56 = vector.broadcast %55 : vector<1x32xf32> to vector<8x32xf32>
    %57 = arith.select %54, %56, %49 : vector<8x32xi1>, vector<8x32xf32>
    %58 = tpu.concatenate %28, %57 in 1 : vector<8x32xf32>, vector<8x32xf32> -> vector<8x64xf32>
    %c0_14 = arith.constant 0 : index
    %c0_15 = arith.constant 0 : index
    %59 = vector.load %arg2[%c0_14, %c0_15] : memref<8x64xf32, #tpu.memory_space<vmem>>, vector<8x64xf32>
    tpu.vector_store %arg2[%c0_14, %c0_15], %58 {strides = array<i32>} : memref<8x64xf32, #tpu.memory_space<vmem>>, vector<8x64xf32>,
    return
  }
}

</mosaic_0001>

<llo_original>
// kernel: tpu_custom_call.1
$region0: #{tpu_custom_call.1}
  #allocation0 [shape = 'u32[]', space=smem, size = 0x4, offset = 0x4, fixed_abs, tag = 'smem constant byte address 0x4 - core index']
  #allocation1 [shape = 'u32[144,128]{1,0:T(1,128)}', space=vmem, size = 0x12000, scoped, tag = 'internal scratch']
  %s0 = inlined_call_operand.vmem [shape: s32[2,8,1], index: 0, kind: input, shape index: {}]
  %s1 = inlined_call_operand.vmem [shape: f32[2,3,32], index: 1, kind: input, shape index: {}]
  %s2 = inlined_call_operand.hbm [shape: f32[8,64], index: 2, kind: output, shape index: {}]
  %s3 = sld [smem:[#allocation0]]
  $region18: #{tpu_custom_call.1} parent=0
    _
  %s5 = ssub.s32 1, %s3
  %s6 = scalar_select 0, %s5, %s3
  $region1: #{tpu_custom_call.1} parent=0
    #allocation2 [shape = 'u8[4096]{0}', space=vmem, size = 0x1000, scoped, tag = 'output window, operand 0, single buffered']
    #allocation3 [shape = 's32[1]{0}', space=sflag, size = 0x4, scoped, tag = 'scoped memory for tpu_custom_call.1']
    %7 = vsyncpa [#allocation3], 0
    // Predicated region
    $region2: #{tpu_custom_call.1} parent=1 // pred_check
      _
    $region3: #{tpu_custom_call.1} parent=1 // pred_check_branch
      %9 = sbr.rel (0) target = $region5
    $region4: #{tpu_custom_call.1} parent=1 // pred_region
      _
    $region5: #{tpu_custom_call.1} parent=1 // pred_fallthru
      _
    // Predicated region
    $region6: #{tpu_custom_call.1} parent=1 // pred_check
      _
    $region7: #{tpu_custom_call.1} parent=1 // pred_check_branch
      %11 = sbr.rel (0) target = $region9
    $region8: #{tpu_custom_call.1} parent=1 // pred_region
      _
    $region9: #{tpu_custom_call.1} parent=1 // pred_fallthru
      _
    %v12 = vld [vmem:[%s0] sm:$0xff]
    %v13 = vld [vmem:[%s1] sm:$0x7]
    %vm14 = vcmp.eq.s32.totalorder %v12, 0
    %v15 = vsel %vm14, 1, 0
    %16 = vset.pattern.permute.xlu0 0
    %17 = vperm.xlu0 %16, %v15
    %v18 = vpop.permute.xlu0 %17
    %vm19 = vcmp.eq.s32.totalorder %v18, 1
    %v20 = vlaneseq
    %v21 = vshrl.u32 %v20, 7
    %v22 = vsub.s32 0, %v21
    %v23 = vrot.slane %v13, %v22
    %v24 = vsel %vm19, %v23, 0.0
    %vm25 = vcmp.eq.s32.totalorder %v12, 1
    %v26 = vsel %vm25, 1, 0
    %27 = vset.pattern.permute.xlu0 0
    %28 = vperm.xlu0 %27, %v26
    %v29 = vpop.permute.xlu0 %28
    %vm30 = vcmp.eq.s32.totalorder %v29, 1
    %v31 = vlaneseq
    %v32 = vshrl.u32 %v31, 7
    %v33 = vsub.s32 1, %v32
    %v34 = vrot.slane %v13, %v33
    %v35 = vsel %vm30, %v34, %v24
    %vm36 = vcmp.eq.s32.totalorder %v12, 2
    %v37 = vsel %vm36, 1, 0
    %38 = vset.pattern.permute.xlu0 0
    %39 = vperm.xlu0 %38, %v37
    %v40 = vpop.permute.xlu0 %39
    %vm41 = vcmp.eq.s32.totalorder %v40, 1
    %v42 = vlaneseq
    %v43 = vshrl.u32 %v42, 7
    %v44 = vsub.s32 2, %v43
    %v45 = vrot.slane %v13, %v44
    %v46 = vsel %vm41, %v45, %v35
    %s47 = scalar_lea.vmem %s0, 8
    %v48 = vld [vmem:[%s47] sm:$0xff]
    %s49 = scalar_lea.vmem %s1, 4
    %v50 = vld [vmem:[%s49] sm:$0x7]
    %vm51 = vcmp.eq.s32.totalorder %v48, 0
    %v52 = vsel %vm51, 1, 0
    %53 = vset.pattern.permute.xlu0 0
    %54 = vperm.xlu0 %53, %v52
    %v55 = vpop.permute.xlu0 %54
    %vm56 = vcmp.eq.s32.totalorder %v55, 1
    %v57 = vlaneseq
    %v58 = vshrl.u32 %v57, 7
    %v59 = vsub.s32 0, %v58
    %v60 = vrot.slane %v50, %v59
    %v61 = vsel %vm56, %v60, 0.0
    %vm62 = vcmp.eq.s32.totalorder %v48, 1
    %v63 = vsel %vm62, 1, 0
    %64 = vset.pattern.permute.xlu0 0
    %65 = vperm.xlu0 %64, %v63
    %v66 = vpop.permute.xlu0 %65
    %vm67 = vcmp.eq.s32.totalorder %v66, 1
    %v68 = vlaneseq
    %v69 = vshrl.u32 %v68, 7
    %v70 = vsub.s32 1, %v69
    %v71 = vrot.slane %v50, %v70
    %v72 = vsel %vm67, %v71, %v61
    %vm73 = vcmp.eq.s32.totalorder %v48, 2
    %v74 = vsel %vm73, 1, 0
    %75 = vset.pattern.permute.xlu0 0
    %76 = vperm.xlu0 %75, %v74
    %v77 = vpop.permute.xlu0 %76
    %vm78 = vcmp.eq.s32.totalorder %v77, 1
    %v79 = vlaneseq
    %v80 = vshrl.u32 %v79, 7
    %v81 = vsub.s32 2, %v80
    %v82 = vrot.slane %v50, %v81
    %v83 = vsel %vm78, %v82, %v72
    %85 = vrot.lane.b32.xlu0 %v83, 32
    %v86 = vpop.permute.xlu0 %85
    %vm88 = vcmask 261120
    %v89 = vsel %vm88, %v46, %v86
    %vm90 = vcmask 523264
    %91 = vst.msk [vmem:[#allocation2] sm:$0xff] %vm90, %v89
    // Predicated region
    $region10: #{tpu_custom_call.1} parent=1 // pred_check
      _
    $region11: #{tpu_custom_call.1} parent=1 // pred_check_branch
      %93 = sbr.rel (0) target = $region13
    $region12: #{tpu_custom_call.1} parent=1 // pred_region
      %s95 = ssub.s32 128, 128
      %96 = vsyncadd [#allocation3], %s95
      %s98 = sshll.u32 [#allocation2], 4
      %s99 = int_to_ptr.vmem [resolvable:$true] %s98
      %101 = dma.vmem_to_hbm [thread:$0]  %s99, 128, %s2, [#allocation3]
    $region13: #{tpu_custom_call.1} parent=1 // pred_fallthru
      _
    // Predicated region
    $region14: #{tpu_custom_call.1} parent=1 // pred_check
      _
    $region15: #{tpu_custom_call.1} parent=1 // pred_check_branch
      %103 = sbr.rel (0) target = $region17
    $region16: #{tpu_custom_call.1} parent=1 // pred_region
      %104 = dma.done [#allocation3], 128
    $region17: #{tpu_custom_call.1} parent=1 // pred_fallthru
      _
    %105 = vsyncpa [#allocation3], 1

</llo_original>
